<compile_context>
chip_gen: v5e
topology: v5e:2x2
jax: 0.10.0
libtpu: 0.0.40
codegen_flags: <defaults>
</compile_context>

<pallas_src>
import jax
import jax.numpy as jnp
from jax.experimental import pallas as pl
from jax.experimental.pallas import tpu as pltpu


_X_BLOCK_BYTES = 4 * 1024 * 1024      # per-buffer X budget (pipeline double-buffers)
_VMEM_LIMIT_BYTES = 32 * 1024 * 1024  # safe on v5e/v6e/v7x; actual use ~9 MiB


def _round_up(n: int, m: int) -> int:
    return ((n + m - 1) // m) * m


def _round_down(n: int, m: int) -> int:
    return (n // m) * m


def _linreg_kernel(x_ref, w_ref, b_ref, o_ref):
    # MXU matmul does the feature reduction; bias is a scalar read from SMEM.
    o_ref[...] = (
        jnp.dot(x_ref[...], w_ref[...], preferred_element_type=jnp.float32)
        + b_ref[0, 0]
    )


def _run_tiles(x_rows, w_mat, b2, tb):
    """Run the streamed kernel over `x_rows` (R, C) with row-tile `tb` (R % tb == 0)."""
    R, C = x_rows.shape
    N = w_mat.shape[1]
    grid = (R // tb,)
    return pl.pallas_call(
        _linreg_kernel,
        out_shape=jax.ShapeDtypeStruct((R, N), jnp.float32),
        grid_spec=pltpu.PrefetchScalarGridSpec(
            num_scalar_prefetch=0,
            grid=grid,
            in_specs=[
                # Streamed X row-tiles (double-buffered by the pipeline).
                pl.BlockSpec((tb, C), lambda i: (i, 0)),
                # Weights, same block every step -> fetched once, stays resident.
                pl.BlockSpec((C, N), lambda i: (0, 0)),
                # Scalar bias in SMEM.
                pl.BlockSpec((1, 1), lambda i: (0, 0), memory_space=pltpu.SMEM),
            ],
            out_specs=pl.BlockSpec((tb, N), lambda i: (i, 0)),
        ),
        compiler_params=pltpu.CompilerParams(
            # Independent batch tiles -> shard across TCs on v7x; no-op elsewhere.
            dimension_semantics=("parallel",),
            vmem_limit_bytes=_VMEM_LIMIT_BYTES,
        ),
    )(x_rows, w_mat, b2)


def linear_regression_forward(x, w, b, *, x_block_bytes=_X_BLOCK_BYTES):
    """y_hat = x @ w + b.

    x: (B, D) f32, w: (D, 1) f32, b: (1,) f32 -> (B, 1) f32.
    """
    B, D = x.shape
    x = x.astype(jnp.float32)
    w_col = w.astype(jnp.float32).reshape(D, 1)
    b2 = b.astype(jnp.float32).reshape(1, 1)

    # Lane packing: for small D dividing 128, pack P samples per 128-lane row so
    # X blocks are lane-dense and the output carries P valid lanes per row.
    if D < 128 and 128 % D == 0:
        P = 128 // D
        # (128, P) block-diagonal weights: column j holds w in lanes j*D:(j+1)*D.
        w_mat = jnp.kron(jnp.eye(P, dtype=jnp.float32), w_col)
        pack = lambda rows: rows.reshape(rows.shape[0] // P, 128)
    else:
        P = 1
        w_mat = w_col
        pack = lambda rows: rows

    row_granule = 8 * P  # packed row-count must be a multiple of 8 (sublane rule)

    # Row tile from the byte budget, aligned to the packing granule.
    tb_rows = max(row_granule, _round_down(x_block_bytes // (D * 4), row_granule))

    b_main = _round_down(B, tb_rows)
    parts = []

    # Main part: tile-aligned rows, streamed with a pipelined grid. No padding.
    if b_main > 0:
        y_main = _run_tiles(pack(x[:b_main]), w_mat, b2, tb_rows // P)
        parts.append(y_main.reshape(b_main, 1))

    # Tail part: pad ONLY the (<tb_rows)-row tail slice up to the granule.
    if b_main < B:
        tail = x[b_main:]
        t = tail.shape[0]
        t_pad = _round_up(t, row_granule)
        if t_pad != t:
            tail = jnp.pad(tail, ((0, t_pad - t), (0, 0)))
        y_tail = _run_tiles(pack(tail), w_mat, b2, t_pad // P)
        parts.append(y_tail.reshape(t_pad, 1)[:t])

    return parts[0] if len(parts) == 1 else jnp.concatenate(parts, axis=0)


if __name__ == "__main__":
    key = jax.random.PRNGKey(0)
    kx, kw, kx2, kx3, kw2, kx4 = jax.random.split(key, 6)

    batch, num_inputs = 8, 32
    sigma = 0.01

    # Deterministic parameter init mirroring the module's __init__:
    #   w = normal(0, sigma, (num_inputs, 1)); b = zeros(1)
    w = sigma * jax.random.normal(kw, (num_inputs, 1), dtype=jnp.float32)
    b = jnp.zeros((1,), dtype=jnp.float32)

    x = jax.random.normal(kx, (batch, num_inputs), dtype=jnp.float32)
    y_hat = jax.block_until_ready(linear_regression_forward(x, w, b))
    y_ref = x @ w + b
    assert y_hat.shape == (batch, 1)
    assert jnp.allclose(y_hat, y_ref, atol=1e-5, rtol=1e-5)

    # Tail-only path (B not a multiple of the packing granule).
    x2 = jax.random.normal(kx2, (20, num_inputs), dtype=jnp.float32)
    y2 = jax.block_until_ready(linear_regression_forward(x2, w, b))
    assert y2.shape == (20, 1)
    assert jnp.allclose(y2, x2 @ w + b, atol=1e-5, rtol=1e-5)

    # Main + tail path (tiny block budget forces multiple grid steps + tail call).
    x3 = jax.random.normal(kx3, (100, num_inputs), dtype=jnp.float32)
    y3 = jax.block_until_ready(
        linear_regression_forward(x3, w, b, x_block_bytes=32 * num_inputs * 4)
    )
    assert y3.shape == (100, 1)
    assert jnp.allclose(y3, x3 @ w + b, atol=1e-5, rtol=1e-5)

    # Unpacked path (D does not divide 128).
    d4 = 200
    w4 = sigma * jax.random.normal(kw2, (d4, 1), dtype=jnp.float32)
    x4 = jax.random.normal(kx4, (16, d4), dtype=jnp.float32)
    y4 = jax.block_until_ready(linear_regression_forward(x4, w4, b))
    assert y4.shape == (16, 1)
    assert jnp.allclose(y4, x4 @ w4 + b, atol=1e-5, rtol=1e-5)

    print("KERNEL_OK")
</pallas_src>

<mosaic_0001>
module attributes {stable_mosaic.version = 11 : i64} {
  func.func @_linreg_kernel(%arg0: i32, %arg1: memref<8x128xf32, #tpu.memory_space<vmem>>, %arg2: memref<128x4xf32, #tpu.memory_space<vmem>>, %arg3: memref<1x1xf32, #tpu.memory_space<smem>>, %arg4: memref<8x4xf32, #tpu.memory_space<vmem>>) attributes {dimension_semantics = [#tpu.dimension_semantics<parallel>], iteration_bounds = array<i64: 1>, scalar_prefetch = 0 : i64, scratch_operands = 0 : i64, tpu.core_type = #tpu.core_type<tc>, window_params = [{transform_indices = @transform_0, window_bounds = array<i64: 8, 128>}, {pipeline_mode = #tpu.pipeline_mode<synchronous>, transform_indices = @transform_1, window_bounds = array<i64: 128, 4>}, {transform_indices = @transform_2, window_bounds = array<i64: 1, 1>}, {transform_indices = @transform_3, window_bounds = array<i64: 8, 4>}]} {
    %c0 = arith.constant 0 : index
    %c0_0 = arith.constant 0 : index
    %0 = vector.load %arg1[%c0, %c0_0] : memref<8x128xf32, #tpu.memory_space<vmem>>, vector<8x128xf32>
    %c0_1 = arith.constant 0 : index
    %c0_2 = arith.constant 0 : index
    %1 = vector.load %arg2[%c0_1, %c0_2] : memref<128x4xf32, #tpu.memory_space<vmem>>, vector<128x4xf32>
    %cst = arith.constant dense<0.000000e+00> : vector<8x4xf32>
    %2 = tpu.matmul %0, %1, %cst {dimension_numbers = #tpu.dot_dimension_numbers<[1], [0], [0], [1], [0, 0, 1, 1], [], []>} : vector<8x128xf32>, vector<128x4xf32>, vector<8x4xf32> -> vector<8x4xf32>
    %c0_3 = arith.constant 0 : index
    %c0_4 = arith.constant 0 : index
    %3 = memref.load %arg3[%c0_3, %c0_4] : memref<1x1xf32, #tpu.memory_space<smem>>
    %4 = vector.broadcast %3 : f32 to vector<8x4xf32>
    %5 = arith.addf %2, %4 : vector<8x4xf32>
    %c0_5 = arith.constant 0 : index
    %c0_6 = arith.constant 0 : index
    %6 = vector.load %arg4[%c0_5, %c0_6] : memref<8x4xf32, #tpu.memory_space<vmem>>, vector<8x4xf32>
    tpu.vector_store %arg4[%c0_5, %c0_6], %5 {strides = array<i32>} : memref<8x4xf32, #tpu.memory_space<vmem>>, vector<8x4xf32>,
    return
  }
  func.func @transform_0(%arg0: i32) -> (i32, i32) {
    %c0_i32 = arith.constant 0 : i32
    %c0_i32_0 = arith.constant 0 : i32
    return %arg0, %c0_i32 : i32, i32
  }
  func.func @transform_1(%arg0: i32) -> (i32, i32) {
    %c0_i32 = arith.constant 0 : i32
    %c0_i32_0 = arith.constant 0 : i32
    %c0_i32_1 = arith.constant 0 : i32
    return %c0_i32, %c0_i32_0 : i32, i32
  }
  func.func @transform_2(%arg0: i32) -> (i32, i32) {
    %c0_i32 = arith.constant 0 : i32
    %c0_i32_0 = arith.constant 0 : i32
    %c0_i32_1 = arith.constant 0 : i32
    return %c0_i32, %c0_i32_0 : i32, i32
  }
  func.func @transform_3(%arg0: i32) -> (i32, i32) {
    %c0_i32 = arith.constant 0 : i32
    %c0_i32_0 = arith.constant 0 : i32
    return %arg0, %c0_i32 : i32, i32
  }
}

</mosaic_0001>

<llo_original>
// kernel: tpu_custom_call.1
$region0: #{tpu_custom_call.1}
  #allocation0 [shape = 'u32[]', space=smem, size = 0x4, offset = 0x4, fixed_abs, tag = 'smem constant byte address 0x4 - core index']
  #allocation1 [shape = 'u32[72,128]{1,0:T(1,128)}', space=vmem, size = 0x9000, scoped, tag = 'internal scratch']
  #allocation2 [shape = 'f32[1,1]{1,0:T(1,128)S(6)}', space=smem, size = 0x200, scoped, tag = 'scoped memory for tpu_custom_call.1']
  %s0 = inlined_call_operand.vmem [shape: f32[8,128], index: 0, kind: input, shape index: {}]
  %s1 = inlined_call_operand.vmem [shape: f32[128,4], index: 1, kind: input, shape index: {}]
  %s2 = inlined_call_operand.<no memory space> [shape: f32[1,1], index: 2, kind: input, shape index: {}]
  %s3 = inlined_call_operand.vmem [shape: f32[8,4], index: 3, kind: output, shape index: {}]
  %s4 = sld [smem:[#allocation0]]
  $region22: #{tpu_custom_call.1} parent=0
    _
  %s6 = ssub.s32 1, %s4
  %s7 = scalar_select 0, %s6, %s4
  %8 = sst [smem:[#allocation2]] %s2
  // Predicated region
  $region2: #{tpu_custom_call.1} parent=0 // pred_check
    _
  $region3: #{tpu_custom_call.1} parent=0 // pred_check_branch
    %10 = sbr.rel (0) target = $region5
  $region4: #{tpu_custom_call.1} parent=0 // pred_region
    _
  $region5: #{tpu_custom_call.1} parent=0 // pred_fallthru
    _
  // Predicated region
  $region6: #{tpu_custom_call.1} parent=0 // pred_check
    _
  $region7: #{tpu_custom_call.1} parent=0 // pred_check_branch
    %12 = sbr.rel (0) target = $region9
  $region8: #{tpu_custom_call.1} parent=0 // pred_region
    _
  $region9: #{tpu_custom_call.1} parent=0 // pred_fallthru
    _
  // Predicated region
  $region10: #{tpu_custom_call.1} parent=0 // pred_check
    _
  $region11: #{tpu_custom_call.1} parent=0 // pred_check_branch
    %14 = sbr.rel (0) target = $region13
  $region12: #{tpu_custom_call.1} parent=0 // pred_region
    _
  $region13: #{tpu_custom_call.1} parent=0 // pred_fallthru
    _
  %v15 = vld [vmem:[%s0] sm:$0xff]
  %v16 = vld [vmem:[%s1] sm:$0xff]
  %v17 = vld [vmem:[%s1 + $0x8] sm:$0xff]
  %v18 = vld [vmem:[%s1 + $0x10] sm:$0xff]
  %v19 = vld [vmem:[%s1 + $0x18] sm:$0xff]
  %v20 = vld [vmem:[%s1 + $0x20] sm:$0xff]
  %v21 = vld [vmem:[%s1 + $0x28] sm:$0xff]
  %v22 = vld [vmem:[%s1 + $0x30] sm:$0xff]
  %v23 = vld [vmem:[%s1 + $0x38] sm:$0xff]
  %v24 = vld [vmem:[%s1 + $0x40] sm:$0xff]
  %v25 = vld [vmem:[%s1 + $0x48] sm:$0xff]
  %v26 = vld [vmem:[%s1 + $0x50] sm:$0xff]
  %v27 = vld [vmem:[%s1 + $0x58] sm:$0xff]
  %v28 = vld [vmem:[%s1 + $0x60] sm:$0xff]
  %v29 = vld [vmem:[%s1 + $0x68] sm:$0xff]
  %v30 = vld [vmem:[%s1 + $0x70] sm:$0xff]
  %v31 = vld [vmem:[%s1 + $0x78] sm:$0xff]
  %s32 = sld [smem:[#allocation2]]
  %v33 = vstv %s32
  %34 = vmatpush.msra.mxu0 %v31
  %35 = vmatpush.msra.mxu0 %v30
  %36 = vmatpush.msra.mxu0 %v29
  %37 = vmatpush.msra.mxu0 %v28
  %38 = vmatpush.msra.mxu0 %v27
  %39 = vmatpush.msra.mxu0 %v26
  %40 = vmatpush.msra.mxu0 %v25
  %41 = vmatpush.msra.mxu0 %v24
  %42 = vmatpush.msra.mxu0 %v23
  %43 = vmatpush.msra.mxu0 %v22
  %44 = vmatpush.msra.mxu0 %v21
  %45 = vmatpush.msra.mxu0 %v20
  %46 = vmatpush.msra.mxu0 %v19
  %47 = vmatpush.msra.mxu0 %v18
  %48 = vmatpush.msra.mxu0 %v17
  %49 = vmatpush.msra.mxu0 %v16
  %50 = vmatmul.f32.gmra.mxu0 %v15
  %v51 = vpop.f32.mrf.mxu0
  %v52 = vadd.f32 %v33, %v51
  %53 = vdwg.mxu0
  %vm54 = vcmask 31744
  %55 = vst.msk [vmem:[%s3] sm:$0xff] %vm54, %v52
  // Predicated region
  $region14: #{tpu_custom_call.1} parent=0 // pred_check
    _
  $region15: #{tpu_custom_call.1} parent=0 // pred_check_branch
    %57 = sbr.rel (0) target = $region17
  $region16: #{tpu_custom_call.1} parent=0 // pred_region
    _
  $region17: #{tpu_custom_call.1} parent=0 // pred_fallthru
    _
  // Predicated region
  $region18: #{tpu_custom_call.1} parent=0 // pred_check
    _
  $region19: #{tpu_custom_call.1} parent=0 // pred_check_branch
    %59 = sbr.rel (0) target = $region21
  $region20: #{tpu_custom_call.1} parent=0 // pred_region
    _
  $region21: #{tpu_custom_call.1} parent=0 // pred_fallthru
    _

</llo_original>
